<compile_context>
chip_gen: v6e
topology: v6e:2x2x1
jax: 0.10.0
libtpu: 0.0.40
codegen_flags: <defaults>
</compile_context>

<pallas_src>
import functools

import jax
import jax.numpy as jnp
from jax.experimental import pallas as pl
from jax.experimental.pallas import tpu as pltpu


def _round_up(x, m):
    return (x + m - 1) // m * m


def _vmem_capacity_bytes(default=64 << 20):
    """Physical VMEM of the current TPU generation (conservative 64 MiB fallback = v7x)."""
    try:
        info = pltpu.get_tpu_info()
        cap = getattr(info, "vmem_capacity_bytes", None)
        if cap:
            return int(cap)
    except Exception:
        pass
    return default


def _layernorm_f32(y, eps):
    # One pass over the data: var = E[y^2] - E[y]^2 (f32; clamped for safety).
    mean = jnp.mean(y, axis=-1, keepdims=True)
    msq = jnp.mean(y * y, axis=-1, keepdims=True)
    var = jnp.maximum(msq - mean * mean, 0.0)
    return (y - mean) * jax.lax.rsqrt(var + eps)


# --------------------------------------------------------------------------------------
# Kernels
# --------------------------------------------------------------------------------------

def _ffn_kernel_resident(x_ref, w1_ref, w2_ref, o_ref, *, eps):
    """Grid = (row tiles,). Whole W1/W2 VMEM-resident (DMA'd once for the whole kernel)."""
    x = x_ref[...]
    x_bf = x.astype(jnp.bfloat16)                               # MXU operand
    h = jnp.dot(x_bf, w1_ref[...], preferred_element_type=jnp.float32)
    h = jnp.maximum(h, 0.0)
    y = jnp.dot(h.astype(jnp.bfloat16), w2_ref[...], preferred_element_type=jnp.float32)
    y = y + x.astype(jnp.float32)                               # residual in f32
    o_ref[...] = _layernorm_f32(y, eps).astype(o_ref.dtype)


def _ffn_kernel_streamed(x_ref, w1_ref, w2_ref, o_ref, acc_ref, xbf_ref, *, eps):
    """Grid = (row tiles [parallel], d_ff tiles [arbitrary/reduction]).

    Per step:  acc += relu(x_bf16 @ W1[:, k]) @ W2[k, :]
    Last k:    out = LayerNorm(acc + x)
    """
    k = pl.program_id(1)
    nk = pl.num_programs(1)

    @pl.when(k == 0)
    def _init():
        acc_ref[...] = jnp.zeros_like(acc_ref)
        # Cache the bf16 copy of the (resident) x row tile once, instead of re-casting every k.
        xbf_ref[...] = x_ref[...].astype(jnp.bfloat16)

    h = jnp.dot(xbf_ref[...], w1_ref[...], preferred_element_type=jnp.float32)
    h = jnp.maximum(h, 0.0)   # ReLU is elementwise over d_ff, so d_ff-tiling is exact.
    acc_ref[...] += jnp.dot(h.astype(jnp.bfloat16), w2_ref[...],
                            preferred_element_type=jnp.float32)

    @pl.when(k == nk - 1)
    def _finalize():
        y = acc_ref[...] + x_ref[...].astype(jnp.float32)       # residual in f32
        o_ref[...] = _layernorm_f32(y, eps).astype(o_ref.dtype)


# --------------------------------------------------------------------------------------
# Tile selection
# --------------------------------------------------------------------------------------

def _choose_config(M8, d_model, d_ff, x_bytes, out_bytes, budget, row_tile=None, ff_tile=None):
    """Return (variant, tm, tk). Costs conservatively assume 2 pipeline buffers per BlockSpec."""
    w_resident = 2 * (2 * d_model * d_ff * 2)         # W1 + W2, bf16, double-buffered

    def resident_cost(tm):
        c = w_resident
        c += 2 * tm * d_model * x_bytes               # x tile (2 bufs)
        c += 2 * tm * d_model * out_bytes             # out tile (2 bufs)
        c += tm * d_ff * 6                            # h f32 + h bf16 temporaries
        c += tm * d_model * 6                         # y f32 + x_bf16 temporaries
        return c

    def streamed_cost(tm, tk):
        c = 2 * (d_model * tk * 2) + 2 * (tk * d_model * 2)   # weight k-tiles, bf16, 2 bufs
        c += 2 * tm * d_model * x_bytes               # x tile (2 bufs)
        c += 2 * tm * d_model * out_bytes             # out tile (2 bufs)
        c += tm * d_model * 4                         # f32 accumulator scratch
        c += tm * d_model * 2                         # bf16 x scratch
        c += tm * tk * 6                              # h f32 + bf16
        c += tm * d_model * 4                         # y at finalize
        return c

    tm_candidates = [1024, 768, 512, 384, 256, 128, 64, 32, 16, 8]
    if row_tile is not None:
        tm_candidates = [max(8, _round_up(int(row_tile), 8))]

    # 1) Prefer fully VMEM-resident weights (single reduction step): no re-streaming at all.
    if ff_tile is None or ff_tile >= d_ff:
        for tm in tm_candidates:
            tm_eff = min(tm, M8)
            if resident_cost(tm_eff) <= budget:
                return "resident", tm_eff, d_ff

    # 2) Stream weights along d_ff; pick the largest row tile / d_ff tile that fits.
    tk_candidates = [1024, 512, 256, 128]
    if ff_tile is not None:
        tk_candidates = [max(128, _round_up(min(int(ff_tile), d_ff), 128))]
    for tm in tm_candidates:
        tm_eff = min(tm, M8)
        for tk in tk_candidates:
            if tk > _round_up(d_ff, 128):
                continue
            if streamed_cost(tm_eff, tk) <= budget:
                return "streamed", tm_eff, tk
    return "streamed", min(8, M8), 128


def _prefer_divisor(tm, M8):
    """Prefer a tm (multiple of 8, within [tm//2, tm]) that divides M8, to avoid wrapper pad."""
    t = tm
    lo = max(8, tm // 2)
    while t >= lo:
        if M8 % t == 0:
            return t
        t -= 8
    return tm


# --------------------------------------------------------------------------------------
# Public API
# --------------------------------------------------------------------------------------

def prepare_ffn_weights(w1, w2):
    """One-time setup: cast weights to bf16 so the per-call path pays no conversion."""
    w1b = w1 if w1.dtype == jnp.bfloat16 else w1.astype(jnp.bfloat16)
    w2b = w2 if w2.dtype == jnp.bfloat16 else w2.astype(jnp.bfloat16)
    return w1b, w2b


def poswise_ffn(inputs, w1, w2, *, eps=1e-5, row_tile=None, ff_tile=None,
                vmem_limit_bytes=None):
    """inputs: [B, S, d_model]; w1: [d_model, d_ff]; w2: [d_ff, d_model] (stored [in, out]).

    Weights may be pre-converted with prepare_ffn_weights (recommended); f32 weights are
    converted here as a fallback. row_tile / ff_tile override the automatic tiling.
    """
    B, S, d_model = inputs.shape
    d_ff = w1.shape[1]
    assert w1.shape == (d_model, d_ff)
    assert w2.shape == (d_ff, d_model)

    M = B * S
    M8 = _round_up(M, 8)
    x_bytes = jnp.dtype(inputs.dtype).itemsize
    out_dtype = inputs.dtype
    out_bytes = jnp.dtype(out_dtype).itemsize

    # Per-generation VMEM budget: v7x has 64 MiB physical, v5e/v6e 128 MiB.
    cap = _vmem_capacity_bytes()
    if vmem_limit_bytes is None:
        vmem_limit_bytes = min(max(cap - (8 << 20), 32 << 20), 112 << 20)
    budget = max(vmem_limit_bytes - (2 << 20), 16 << 20)

    variant, tm, tk = _choose_config(M8, d_model, d_ff, x_bytes, out_bytes, budget,
                                     row_tile=row_tile, ff_tile=ff_tile)

    # Megacore (v7x has 2 TensorCores): with resident weights, extra row tiles cost nothing
    # in weight traffic, so keep at least two of them when there are enough rows.
    if variant == "resident" and row_tile is None and M8 >= 1024 and M8 // tm < 2:
        tm = max(8, _round_up((M8 + 1) // 2, 8))
    tm = _prefer_divisor(tm, M8)

    M_pad = _round_up(M, tm)

    # Activations stay in their native dtype (no wrapper-side cast); pad rows with zeros only
    # when unavoidable (zero rows LayerNorm to zero and are sliced off afterwards).
    x2d = inputs.reshape(M, d_model)
    if M_pad != M:
        x2d = jnp.pad(x2d, ((0, M_pad - M), (0, 0)))

    # Weights: bf16 (half DMA bytes, native MXU rate). No-op if prepare_ffn_weights was used.
    w1b = w1 if w1.dtype == jnp.bfloat16 else w1.astype(jnp.bfloat16)
    w2b = w2 if w2.dtype == jnp.bfloat16 else w2.astype(jnp.bfloat16)

    compiler_params_kwargs = dict(vmem_limit_bytes=int(vmem_limit_bytes))

    if variant == "resident":
        grid = (M_pad // tm,)
        out2d = pl.pallas_call(
            functools.partial(_ffn_kernel_resident, eps=eps),
            out_shape=jax.ShapeDtypeStruct((M_pad, d_model), out_dtype),
            grid_spec=pltpu.PrefetchScalarGridSpec(
                num_scalar_prefetch=0,
                grid=grid,
                in_specs=[
                    pl.BlockSpec((tm, d_model), lambda i: (i, 0)),
                    # Constant block index -> weights DMA'd exactly once for the whole grid.
                    pl.BlockSpec((d_model, d_ff), lambda i: (0, 0)),
                    pl.BlockSpec((d_ff, d_model), lambda i: (0, 0)),
                ],
                out_specs=pl.BlockSpec((tm, d_model), lambda i: (i, 0)),
            ),
            compiler_params=pltpu.CompilerParams(
                dimension_semantics=("parallel",), **compiler_params_kwargs),
        )(x2d, w1b, w2b)
    else:
        # Zero-padding the d_ff axis is exact: relu(x @ 0) = 0 and 0 @ W2 adds nothing.
        d_ff_pad = _round_up(d_ff, tk)
        if d_ff_pad != d_ff:
            w1b = jnp.pad(w1b, ((0, 0), (0, d_ff_pad - d_ff)))
            w2b = jnp.pad(w2b, ((0, d_ff_pad - d_ff), (0, 0)))
        grid = (M_pad // tm, d_ff_pad // tk)
        out2d = pl.pallas_call(
            functools.partial(_ffn_kernel_streamed, eps=eps),
            out_shape=jax.ShapeDtypeStruct((M_pad, d_model), out_dtype),
            grid_spec=pltpu.PrefetchScalarGridSpec(
                num_scalar_prefetch=0,
                grid=grid,
                in_specs=[
                    # x row tile: block index independent of k -> resident across the reduction.
                    pl.BlockSpec((tm, d_model), lambda i, k: (i, 0)),
                    # Weight tiles streamed along d_ff.
                    pl.BlockSpec((d_model, tk), lambda i, k: (0, k)),
                    pl.BlockSpec((tk, d_model), lambda i, k: (k, 0)),
                ],
                # Same output block across k -> resident output, written only at the last step.
                out_specs=pl.BlockSpec((tm, d_model), lambda i, k: (i, 0)),
                scratch_shapes=[
                    pltpu.VMEM((tm, d_model), jnp.float32),   # f32 accumulator
                    pltpu.VMEM((tm, d_model), jnp.bfloat16),  # cached bf16 x tile
                ],
            ),
            compiler_params=pltpu.CompilerParams(
                dimension_semantics=("parallel", "arbitrary"), **compiler_params_kwargs),
        )(x2d, w1b, w2b)

    if M_pad != M:
        out2d = out2d[:M]
    return out2d.reshape(B, S, d_model)


def reference_ffn(inputs, w1, w2, eps=1e-5):
    """Pure-JAX f32 reference matching the torch forward pass."""
    h = jnp.maximum(inputs @ w1, 0.0)
    y = h @ w2 + inputs
    mean = jnp.mean(y, axis=-1, keepdims=True)
    var = jnp.mean((y - mean) ** 2, axis=-1, keepdims=True)
    return (y - mean) / jnp.sqrt(var + eps)


if __name__ == "__main__":
    # Small shapes consistent with the module's forward contract ([batch, seq, d_model]).
    B, S, d_model, d_ff = 2, 8, 128, 256

    key = jax.random.PRNGKey(0)
    k_x, k_w1, k_w2 = jax.random.split(key, 3)

    inputs = jax.random.normal(k_x, (B, S, d_model), dtype=jnp.float32)
    # nn.Linear(d_model, d_ff, bias=False) / nn.Linear(d_ff, d_model, bias=False), stored [in, out].
    w1 = jax.random.normal(k_w1, (d_model, d_ff), dtype=jnp.float32) * 0.1
    w2 = jax.random.normal(k_w2, (d_ff, d_model), dtype=jnp.float32) * 0.1

    # One-time weight prep (hoisted out of the per-call path).
    w1b, w2b = prepare_ffn_weights(w1, w2)
    ref = reference_ffn(inputs, w1, w2)

    # Auto-tiled path (weights fit VMEM at these sizes -> "resident" single-pass variant).
    out = jax.block_until_ready(poswise_ffn(inputs, w1b, w2b))
    assert out.shape == (B, S, d_model)
    # bf16 matmul operands (f32 accumulation) -> tolerance loosened vs pure f32.
    err = float(jnp.max(jnp.abs(out - ref)))
    assert jnp.allclose(out, ref, atol=5e-2, rtol=5e-2), f"resident: max abs err = {err}"

    # Also exercise the d_ff-streamed accumulator path (used when weights don't fit VMEM).
    out_s = jax.block_until_ready(poswise_ffn(inputs, w1b, w2b, row_tile=8, ff_tile=128))
    err_s = float(jnp.max(jnp.abs(out_s - ref)))
    assert jnp.allclose(out_s, ref, atol=5e-2, rtol=5e-2), f"streamed: max abs err = {err_s}"

    print("KERNEL_OK")
</pallas_src>

<mosaic_0001>
module attributes {stable_mosaic.version = 11 : i64} {
  func.func @_ffn_kernel_resident(%arg0: i32, %arg1: memref<16x128xf32, #tpu.memory_space<vmem>>, %arg2: memref<128x256xbf16, #tpu.memory_space<vmem>>, %arg3: memref<256x128xbf16, #tpu.memory_space<vmem>>, %arg4: memref<16x128xf32, #tpu.memory_space<vmem>>) attributes {dimension_semantics = [#tpu.dimension_semantics<parallel>], iteration_bounds = array<i64: 1>, scalar_prefetch = 0 : i64, scratch_operands = 0 : i64, tpu.core_type = #tpu.core_type<tc>, window_params = [{transform_indices = @transform_0, window_bounds = array<i64: 16, 128>}, {pipeline_mode = #tpu.pipeline_mode<synchronous>, transform_indices = @transform_1, window_bounds = array<i64: 128, 256>}, {pipeline_mode = #tpu.pipeline_mode<synchronous>, transform_indices = @transform_2, window_bounds = array<i64: 256, 128>}, {transform_indices = @transform_3, window_bounds = array<i64: 16, 128>}]} {
    %c0 = arith.constant 0 : index
    %c0_0 = arith.constant 0 : index
    %0 = vector.load %arg1[%c0, %c0_0] : memref<16x128xf32, #tpu.memory_space<vmem>>, vector<16x128xf32>
    %1 = arith.truncf %0 : vector<16x128xf32> to vector<16x128xbf16>
    %c0_1 = arith.constant 0 : index
    %c0_2 = arith.constant 0 : index
    %2 = vector.load %arg2[%c0_1, %c0_2] : memref<128x256xbf16, #tpu.memory_space<vmem>>, vector<128x256xbf16>
    %cst = arith.constant dense<0.000000e+00> : vector<16x256xf32>
    %3 = tpu.matmul %1, %2, %cst {dimension_numbers = #tpu.dot_dimension_numbers<[1], [0], [0], [1], [0, 0, 1, 1], [], []>} : vector<16x128xbf16>, vector<128x256xbf16>, vector<16x256xf32> -> vector<16x256xf32>
    %cst_3 = arith.constant 0.000000e+00 : f32
    %4 = vector.broadcast %cst_3 : f32 to vector<16x256xf32>
    %5 = arith.maximumf %3, %4 : vector<16x256xf32>
    %6 = arith.truncf %5 : vector<16x256xf32> to vector<16x256xbf16>
    %c0_4 = arith.constant 0 : index
    %c0_5 = arith.constant 0 : index
    %7 = vector.load %arg3[%c0_4, %c0_5] : memref<256x128xbf16, #tpu.memory_space<vmem>>, vector<256x128xbf16>
    %cst_6 = arith.constant dense<0.000000e+00> : vector<16x128xf32>
    %8 = tpu.matmul %6, %7, %cst_6 {dimension_numbers = #tpu.dot_dimension_numbers<[1], [0], [0], [1], [0, 0, 1, 1], [], []>} : vector<16x256xbf16>, vector<256x128xbf16>, vector<16x128xf32> -> vector<16x128xf32>
    %9 = arith.addf %8, %0 : vector<16x128xf32>
    %cst_7 = arith.constant dense<0.000000e+00> : vector<16xf32>
    %10 = vector.multi_reduction <add>, %9, %cst_7 [1] : vector<16x128xf32> to vector<16xf32>
    %11 = vector.shape_cast %10 : vector<16xf32> to vector<16x1xf32>
    %cst_8 = arith.constant 1.280000e+02 : f32
    %12 = vector.broadcast %cst_8 : f32 to vector<16x1xf32>
    %13 = arith.divf %11, %12 : vector<16x1xf32>
    %14 = arith.mulf %9, %9 : vector<16x128xf32>
    %cst_9 = arith.constant dense<0.000000e+00> : vector<16xf32>
    %15 = vector.multi_reduction <add>, %14, %cst_9 [1] : vector<16x128xf32> to vector<16xf32>
    %16 = vector.shape_cast %15 : vector<16xf32> to vector<16x1xf32>
    %cst_10 = arith.constant 1.280000e+02 : f32
    %17 = vector.broadcast %cst_10 : f32 to vector<16x1xf32>
    %18 = arith.divf %16, %17 : vector<16x1xf32>
    %19 = arith.mulf %13, %13 : vector<16x1xf32>
    %20 = arith.subf %18, %19 : vector<16x1xf32>
    %cst_11 = arith.constant 0.000000e+00 : f32
    %21 = vector.broadcast %cst_11 : f32 to vector<16x1xf32>
    %22 = arith.maximumf %20, %21 : vector<16x1xf32>
    %23 = vector.broadcast %13 : vector<16x1xf32> to vector<16x128xf32>
    %24 = arith.subf %9, %23 : vector<16x128xf32>
    %cst_12 = arith.constant 9.99999974E-6 : f32
    %25 = vector.broadcast %cst_12 : f32 to vector<16x1xf32>
    %26 = arith.addf %22, %25 : vector<16x1xf32>
    %27 = math.rsqrt %26 : vector<16x1xf32>
    %28 = vector.broadcast %27 : vector<16x1xf32> to vector<16x128xf32>
    %29 = arith.mulf %24, %28 : vector<16x128xf32>
    %c0_13 = arith.constant 0 : index
    %c0_14 = arith.constant 0 : index
    %30 = vector.load %arg4[%c0_13, %c0_14] : memref<16x128xf32, #tpu.memory_space<vmem>>, vector<16x128xf32>
    tpu.vector_store %arg4[%c0_13, %c0_14], %29 {strides = array<i32>} : memref<16x128xf32, #tpu.memory_space<vmem>>, vector<16x128xf32>,
    return
  }
  func.func @transform_0(%arg0: i32) -> (i32, i32) {
    %c0_i32 = arith.constant 0 : i32
    %c0_i32_0 = arith.constant 0 : i32
    return %arg0, %c0_i32 : i32, i32
  }
  func.func @transform_1(%arg0: i32) -> (i32, i32) {
    %c0_i32 = arith.constant 0 : i32
    %c0_i32_0 = arith.constant 0 : i32
    %c0_i32_1 = arith.constant 0 : i32
    return %c0_i32, %c0_i32_0 : i32, i32
  }
  func.func @transform_2(%arg0: i32) -> (i32, i32) {
    %c0_i32 = arith.constant 0 : i32
    %c0_i32_0 = arith.constant 0 : i32
    %c0_i32_1 = arith.constant 0 : i32
    return %c0_i32, %c0_i32_0 : i32, i32
  }
  func.func @transform_3(%arg0: i32) -> (i32, i32) {
    %c0_i32 = arith.constant 0 : i32
    %c0_i32_0 = arith.constant 0 : i32
    return %arg0, %c0_i32 : i32, i32
  }
}

</mosaic_0001>

<llo_original>
// kernel: tpu_custom_call.1
$region0: #{tpu_custom_call.1}
  #allocation0 [shape = 'u32[]', space=smem, size = 0x4, offset = 0x4, fixed_abs, tag = 'smem constant byte address 0x4 - core index']
  #allocation1 [shape = 'u32[144,128]{1,0:T(1,128)}', space=vmem, size = 0x12000, scoped, tag = 'internal scratch']
  %s0 = inlined_call_operand.hbm [shape: f32[16,128], index: 0, kind: input, shape index: {}]
  %s1 = inlined_call_operand.hbm [shape: bf16[128,256], index: 1, kind: input, shape index: {}]
  %s2 = inlined_call_operand.hbm [shape: bf16[256,128], index: 2, kind: input, shape index: {}]
  %s3 = inlined_call_operand.hbm [shape: f32[16,128], index: 3, kind: output, shape index: {}]
  %s4 = sld [smem:[#allocation0]]
  $region34: #{tpu_custom_call.1} parent=0
    _
  %s6 = ssub.s32 1, %s4
  %s7 = scalar_select 0, %s6, %s4
  $region1: #{tpu_custom_call.1} parent=0
    #allocation2 [shape = 'u8[8192]{0}', space=vmem, size = 0x2000, scoped, tag = 'input window, operand 0, single buffered']
    #allocation3 [shape = 's32[1]{0}', space=sflag, size = 0x4, scoped, tag = 'scoped memory for tpu_custom_call.1']
    #allocation4 [shape = 's32[1]{0}', space=sflag, size = 0x4, scoped, tag = 'scoped memory for tpu_custom_call.1']
    #allocation5 [shape = 'u8[65536]{0}', space=vmem, size = 0x10000, scoped, tag = 'input window, operand 1, single buffered']
    #allocation6 [shape = 's32[1]{0}', space=sflag, size = 0x4, scoped, tag = 'scoped memory for tpu_custom_call.1']
    #allocation7 [shape = 'u8[65536]{0}', space=vmem, size = 0x10000, scoped, tag = 'input window, operand 2, single buffered']
    #allocation8 [shape = 'u8[8192]{0}', space=vmem, size = 0x2000, scoped, tag = 'output window, operand 0, single buffered']
    %8 = vsyncpa [#allocation3], 0
    %9 = vsyncpa [#allocation6], 0
    %10 = vsyncpa [#allocation4], 0
    // Predicated region
    $region2: #{tpu_custom_call.1} parent=1 // pred_check
      _
    $region3: #{tpu_custom_call.1} parent=1 // pred_check_branch
      %12 = sbr.rel (0) target = $region5
    $region4: #{tpu_custom_call.1} parent=1 // pred_region
      %s14 = ssub.s32 256, 256
      %15 = vsyncadd [#allocation3], %s14
      %s16 = sshll.u32 [#allocation2], 4
      %s17 = int_to_ptr.vmem [resolvable:$true] %s16
      %22 = dma.hbm_to_vmem [thread:$0]  %s0, 256, %s17, [#allocation3], 128, 128, 8
    $region5: #{tpu_custom_call.1} parent=1 // pred_fallthru
      _
    // Predicated region
    $region6: #{tpu_custom_call.1} parent=1 // pred_check
      _
    $region7: #{tpu_custom_call.1} parent=1 // pred_check_branch
      %24 = sbr.rel (0) target = $region9
    $region8: #{tpu_custom_call.1} parent=1 // pred_region
      %s26 = ssub.s32 2048, 2048
      %27 = vsyncadd [#allocation6], %s26
      %s28 = sshll.u32 [#allocation5], 4
      %s29 = int_to_ptr.vmem [resolvable:$true] %s28
      %34 = dma.hbm_to_vmem [thread:$0]  %s1, 2048, %s29, [#allocation6], 128, 128, 8
    $region9: #{tpu_custom_call.1} parent=1 // pred_fallthru
      _
    // Predicated region
    $region10: #{tpu_custom_call.1} parent=1 // pred_check
      _
    $region11: #{tpu_custom_call.1} parent=1 // pred_check_branch
      %36 = sbr.rel (0) target = $region13
    $region12: #{tpu_custom_call.1} parent=1 // pred_region
      %s38 = ssub.s32 2048, 2048
      %39 = vsyncadd [#allocation6], %s38
      %s40 = sshll.u32 [#allocation7], 4
      %s41 = int_to_ptr.vmem [resolvable:$true] %s40
      %46 = dma.hbm_to_vmem [thread:$0]  %s2, 2048, %s41, [#allocation6], 64, 64, 4
    $region13: #{tpu_custom_call.1} parent=1 // pred_fallthru
      _
    // Predicated region
    $region14: #{tpu_custom_call.1} parent=1 // pred_check
      _
    $region15: #{tpu_custom_call.1} parent=1 // pred_check_branch
      %48 = sbr.rel (0) target = $region17
    $region16: #{tpu_custom_call.1} parent=1 // pred_region
      %49 = dma.done [#allocation3], 256
    $region17: #{tpu_custom_call.1} parent=1 // pred_fallthru
      _
    // Predicated region
    $region18: #{tpu_custom_call.1} parent=1 // pred_check
      _
    $region19: #{tpu_custom_call.1} parent=1 // pred_check_branch
      %51 = sbr.rel (0) target = $region21
    $region20: #{tpu_custom_call.1} parent=1 // pred_region
      %52 = dma.done [#allocation6], 2048
    $region21: #{tpu_custom_call.1} parent=1 // pred_fallthru
      _
    // Predicated region
    $region22: #{tpu_custom_call.1} parent=1 // pred_check
      _
    $region23: #{tpu_custom_call.1} parent=1 // pred_check_branch
      %54 = sbr.rel (0) target = $region25
    $region24: #{tpu_custom_call.1} parent=1 // pred_region
      %55 = dma.done [#allocation6], 2048
    $region25: #{tpu_custom_call.1} parent=1 // pred_fallthru
      _
    %v57 = vld [vmem:[#allocation2] sm:$0xff]
    %v58 = vld [vmem:[#allocation2 + $0x8] sm:$0xff]
    %v59 = vpack.c.bf16 %v58, %v57
    %v60 = vld [vmem:[#allocation5] sm:$0xff]
    %v61 = vld [vmem:[#allocation5 + $0x8] sm:$0xff]
    %v62 = vld [vmem:[#allocation5 + $0x10] sm:$0xff]
    %v63 = vld [vmem:[#allocation5 + $0x18] sm:$0xff]
    %v64 = vld [vmem:[#allocation5 + $0x20] sm:$0xff]
    %v65 = vld [vmem:[#allocation5 + $0x28] sm:$0xff]
    %v66 = vld [vmem:[#allocation5 + $0x30] sm:$0xff]
    %v67 = vld [vmem:[#allocation5 + $0x38] sm:$0xff]
    %v68 = vld [vmem:[#allocation5 + $0x40] sm:$0xff]
    %v69 = vld [vmem:[#allocation5 + $0x48] sm:$0xff]
    %v70 = vld [vmem:[#allocation5 + $0x50] sm:$0xff]
    %v71 = vld [vmem:[#allocation5 + $0x58] sm:$0xff]
    %v72 = vld [vmem:[#allocation5 + $0x60] sm:$0xff]
    %v73 = vld [vmem:[#allocation5 + $0x68] sm:$0xff]
    %v74 = vld [vmem:[#allocation5 + $0x70] sm:$0xff]
    %v75 = vld [vmem:[#allocation5 + $0x78] sm:$0xff]
    %v92 = vunpack.c.l.b16 %v60
    %v93 = vunpack.c.h.b16 %v60
    %v94 = vunpack.c.l.b16 %v61
    %v95 = vunpack.c.h.b16 %v61
    %v96 = vunpack.c.l.b16 %v62
    %v97 = vunpack.c.h.b16 %v62
    %v98 = vunpack.c.l.b16 %v63
    %v99 = vunpack.c.h.b16 %v63
    %v100 = vunpack.c.l.b16 %v64
    %v101 = vunpack.c.h.b16 %v64
    %v102 = vunpack.c.l.b16 %v65
    %v103 = vunpack.c.h.b16 %v65
    %v104 = vunpack.c.l.b16 %v66
    %v105 = vunpack.c.h.b16 %v66
    %v106 = vunpack.c.l.b16 %v67
    %v107 = vunpack.c.h.b16 %v67
    %v108 = vunpack.c.l.b16 %v68
    %v109 = vunpack.c.h.b16 %v68
    %v110 = vunpack.c.l.b16 %v69
    %v111 = vunpack.c.h.b16 %v69
    %v112 = vunpack.c.l.b16 %v70
    %v113 = vunpack.c.h.b16 %v70
    %v114 = vunpack.c.l.b16 %v71
    %v115 = vunpack.c.h.b16 %v71
    %v116 = vunpack.c.l.b16 %v72
    %v117 = vunpack.c.h.b16 %v72
    %v118 = vunpack.c.l.b16 %v73
    %v119 = vunpack.c.h.b16 %v73
    %v120 = vunpack.c.l.b16 %v74
    %v121 = vunpack.c.h.b16 %v74
    %v122 = vunpack.c.l.b16 %v75
    %v123 = vunpack.c.h.b16 %v75
    %v124 = vpack.c.b16 %v94, %v92
    %v125 = vpack.c.b16 %v95, %v93
    %v126 = vpack.c.b16 %v98, %v96
    %v127 = vpack.c.b16 %v99, %v97
    %v128 = vpack.c.b16 %v102, %v100
    %v129 = vpack.c.b16 %v103, %v101
    %v130 = vpack.c.b16 %v106, %v104
    %v131 = vpack.c.b16 %v107, %v105
    %v132 = vpack.c.b16 %v110, %v108
    %v133 = vpack.c.b16 %v111, %v109
    %v134 = vpack.c.b16 %v114, %v112
    %v135 = vpack.c.b16 %v115, %v113
    %v136 = vpack.c.b16 %v118, %v116
    %v137 = vpack.c.b16 %v119, %v117
    %v138 = vpack.c.b16 %v122, %v120
    %v139 = vpack.c.b16 %v123, %v121
    %156 = vmatprep.subr.bf16.mxu0 %v139
    %157 = vmatpush1.bf16.msra.mxu0 %v138
    %158 = vmatprep.subr.bf16.mxu0 %v137
    %159 = vmatpush1.bf16.msra.mxu0 %v136
    %160 = vmatprep.subr.bf16.mxu0 %v135
    %161 = vmatpush1.bf16.msra.mxu0 %v134
    %162 = vmatprep.subr.bf16.mxu0 %v133
    %163 = vmatpush1.bf16.msra.mxu0 %v132
    %164 = vmatprep.subr.bf16.mxu0 %v131
    %165 = vmatpush1.bf16.msra.mxu0 %v130
    %166 = vmatprep.subr.bf16.mxu0 %v129
    %167 = vmatpush1.bf16.msra.mxu0 %v128
    %168 = vmatprep.subr.bf16.mxu0 %v127
    %169 = vmatpush1.bf16.msra.mxu0 %v126
    %170 = vmatprep.subr.bf16.mxu0 %v125
    %171 = vmatpush1.bf16.msra.mxu0 %v124
    %172 = vmatprep.subr.bf16.mxu0 0
    %173 = vmatpush2.bf16.msra.mxu0 0
    %174 = vmatprep.subr.bf16.mxu0 0
    %175 = vmatpush2.bf16.msra.mxu0 0
    %176 = vmatprep.subr.bf16.mxu0 0
    %177 = vmatpush2.bf16.msra.mxu0 0
    %178 = vmatprep.subr.bf16.mxu0 0
    %179 = vmatpush2.bf16.msra.mxu0 0
    %180 = vmatprep.subr.bf16.mxu0 0
    %181 = vmatpush2.bf16.msra.mxu0 0
    %182 = vmatprep.subr.bf16.mxu0 0
    %183 = vmatpush2.bf16.msra.mxu0 0
    %184 = vmatprep.subr.bf16.mxu0 0
    %185 = vmatpush2.bf16.msra.mxu0 0
    %186 = vmatprep.subr.bf16.mxu0 0
    %187 = vmatpush2.bf16.msra.mxu0 0
    %188 = vmatprep.mubr.bf16.mxu0 0
    %189 = vmatmul.mubr.bf16.gmra.mxu0 %v59
    %v190 = vpop.f32.mrf.mxu0
    %v191 = vadd.f32 0.0, %v190
    %v192 = vpop.f32.mrf.mxu0
    %v193 = vadd.f32 0.0, %v192
    %v194 = vpop.f32.mrf.mxu0
    %v195 = vadd.f32 0.0, %v194
    %v196 = vpop.f32.mrf.mxu0
    %v197 = vadd.f32 0.0, %v196
    %198 = vdwg.mxu0
    %v199 = vmax.f32 %v191, 0.0
    %v200 = vmax.f32 %v193, 0.0
    %v201 = vmax.f32 %v195, 0.0
    %v202 = vmax.f32 %v197, 0.0
    %v203 = vpack.c.bf16 %v201, %v199
    %v204 = vpack.c.bf16 %v202, %v200
    %v205 = vld [vmem:[#allocation7] sm:$0xf]
    %v206 = vld [vmem:[#allocation7 + $0x4] sm:$0xf]
    %v207 = vld [vmem:[#allocation7 + $0x8] sm:$0xf]
    %v208 = vld [vmem:[#allocation7 + $0xc] sm:$0xf]
    %v209 = vld [vmem:[#allocation7 + $0x10] sm:$0xf]
    %v210 = vld [vmem:[#allocation7 + $0x14] sm:$0xf]
    %v211 = vld [vmem:[#allocation7 + $0x18] sm:$0xf]
    %v212 = vld [vmem:[#allocation7 + $0x1c] sm:$0xf]
    %v213 = vld [vmem:[#allocation7 + $0x20] sm:$0xf]
    %v214 = vld [vmem:[#allocation7 + $0x24] sm:$0xf]
    %v215 = vld [vmem:[#allocation7 + $0x28] sm:$0xf]
    %v216 = vld [vmem:[#allocation7 + $0x2c] sm:$0xf]
    %v217 = vld [vmem:[#allocation7 + $0x30] sm:$0xf]
    %v218 = vld [vmem:[#allocation7 + $0x34] sm:$0xf]
    %v219 = vld [vmem:[#allocation7 + $0x38] sm:$0xf]
    %v220 = vld [vmem:[#allocation7 + $0x3c] sm:$0xf]
    %v221 = vld [vmem:[#allocation7 + $0x40] sm:$0xf]
    %v222 = vld [vmem:[#allocation7 + $0x44] sm:$0xf]
    %v223 = vld [vmem:[#allocation7 + $0x48] sm:$0xf]
    %v224 = vld [vmem:[#allocation7 + $0x4c] sm:$0xf]
    %v225 = vld [vmem:[#allocation7 + $0x50] sm:$0xf]
    %v226 = vld [vmem:[#allocation7 + $0x54] sm:$0xf]
    %v227 = vld [vmem:[#allocation7 + $0x58] sm:$0xf]
    %v228 = vld [vmem:[#allocation7 + $0x5c] sm:$0xf]
    %v229 = vld [vmem:[#allocation7 + $0x60] sm:$0xf]
    %v230 = vld [vmem:[#allocation7 + $0x64] sm:$0xf]
    %v231 = vld [vmem:[#allocation7 + $0x68] sm:$0xf]
    %v232 = vld [vmem:[#allocation7 + $0x6c] sm:$0xf]
    %v233 = vld [vmem:[#allocation7 + $0x70] sm:$0xf]
    %v234 = vld [vmem:[#allocation7 + $0x74] sm:$0xf]
    %v235 = vld [vmem:[#allocation7 + $0x78] sm:$0xf]
    %v236 = vld [vmem:[#allocation7 + $0x7c] sm:$0xf]
    %v269 = vunpack.c.l.b16 %v205
    %v270 = vunpack.c.l.b16 %v206
    %v271 = vunpack.c.l.b16 %v207
    %v272 = vunpack.c.l.b16 %v208
    %v273 = vunpack.c.l.b16 %v209
    %v274 = vunpack.c.l.b16 %v210
    %v275 = vunpack.c.l.b16 %v211
    %v276 = vunpack.c.l.b16 %v212
    %v277 = vunpack.c.l.b16 %v213
    %v278 = vunpack.c.l.b16 %v214
    %v279 = vunpack.c.l.b16 %v215
    %v280 = vunpack.c.l.b16 %v216
    %v281 = vunpack.c.l.b16 %v217
    %v282 = vunpack.c.l.b16 %v218
    %v283 = vunpack.c.l.b16 %v219
    %v284 = vunpack.c.l.b16 %v220
    %v285 = vunpack.c.l.b16 %v221
    %v286 = vunpack.c.l.b16 %v222
    %v287 = vunpack.c.l.b16 %v223
    %v288 = vunpack.c.l.b16 %v224
    %v289 = vunpack.c.l.b16 %v225
    %v290 = vunpack.c.l.b16 %v226
    %v291 = vunpack.c.l.b16 %v227
    %v292 = vunpack.c.l.b16 %v228
    %v293 = vunpack.c.l.b16 %v229
    %v294 = vunpack.c.l.b16 %v230
    %v295 = vunpack.c.l.b16 %v231
    %v296 = vunpack.c.l.b16 %v232
    %v297 = vunpack.c.l.b16 %v233
    %v298 = vunpack.c.l.b16 %v234
    %v299 = vunpack.c.l.b16 %v235
    %v300 = vunpack.c.l.b16 %v236
    %v301 = vpack.c.b16 %v270, %v269
    %v302 = vpack.c.b16 %v272, %v271
    %v303 = vpack.c.b16 %v274, %v273
    %v304 = vpack.c.b16 %v276, %v275
    %v305 = vpack.c.b16 %v278, %v277
    %v306 = vpack.c.b16 %v280, %v279
    %v307 = vpack.c.b16 %v282, %v281
    %v308 = vpack.c.b16 %v284, %v283
    %v309 = vpack.c.b16 %v286, %v285
    %v310 = vpack.c.b16 %v288, %v287
    %v311 = vpack.c.b16 %v290, %v289
    %v312 = vpack.c.b16 %v292, %v291
    %v313 = vpack.c.b16 %v294, %v293
    %v314 = vpack.c.b16 %v296, %v295
    %v315 = vpack.c.b16 %v298, %v297
    %v316 = vpack.c.b16 %v300, %v299
    %333 = vmatprep.subr.bf16.mxu0 0
    %334 = vmatpush1.bf16.msra.mxu0 %v308
    %335 = vmatprep.subr.bf16.mxu0 0
    %336 = vmatpush1.bf16.msra.mxu0 %v307
    %337 = vmatprep.subr.bf16.mxu0 0
    %338 = vmatpush1.bf16.msra.mxu0 %v306
    %339 = vmatprep.subr.bf16.mxu0 0
    %340 = vmatpush1.bf16.msra.mxu0 %v305
    %341 = vmatprep.subr.bf16.mxu0 0
    %342 = vmatpush1.bf16.msra.mxu0 %v304
    %343 = vmatprep.subr.bf16.mxu0 0
    %344 = vmatpush1.bf16.msra.mxu0 %v303
    %345 = vmatprep.subr.bf16.mxu0 0
    %346 = vmatpush1.bf16.msra.mxu0 %v302
    %347 = vmatprep.subr.bf16.mxu0 0
    %348 = vmatpush1.bf16.msra.mxu0 %v301
    %349 = vmatprep.subr.bf16.mxu0 0
    %350 = vmatpush2.bf16.msra.mxu0 %v316
    %351 = vmatprep.subr.bf16.mxu0 0
    %352 = vmatpush2.bf16.msra.mxu0 %v315
    %353 = vmatprep.subr.bf16.mxu0 0
    %354 = vmatpush2.bf16.msra.mxu0 %v314
    %355 = vmatprep.subr.bf16.mxu0 0
    %356 = vmatpush2.bf16.msra.mxu0 %v313
    %357 = vmatprep.subr.bf16.mxu0 0
    %358 = vmatpush2.bf16.msra.mxu0 %v312
    %359 = vmatprep.subr.bf16.mxu0 0
    %360 = vmatpush2.bf16.msra.mxu0 %v311
    %361 = vmatprep.subr.bf16.mxu0 0
    %362 = vmatpush2.bf16.msra.mxu0 %v310
    %363 = vmatprep.subr.bf16.mxu0 0
    %364 = vmatpush2.bf16.msra.mxu0 %v309
    %365 = vmatprep.mubr.bf16.mxu0 %v204
    %366 = vmatmul.mubr.bf16.gmra.mxu0 %v203
    %v367 = vpop.f32.mrf.mxu0
    %v368 = vadd.f32 %v57, %v367
    %v369 = vpop.f32.mrf.mxu0
    %v370 = vpop.f32.mrf.mxu0
    %v371 = vadd.f32 %v58, %v370
    %v372 = vpop.f32.mrf.mxu0
    %373 = vdwg.mxu0
    %374 = vadd.xlane.f32.xlu0 %v368
    %v375 = vpop.xlane.xlu0 %374
    %376 = vadd.xlane.f32.xlu0 %v371
    %v377 = vpop.xlane.xlu0 %376
    %v378 = vrcp.pop 128.0
    %v379 = vmul.f32 %v375, %v378
    %v380 = vmul.f32 %v377, %v378
    %v381 = vmul.f32 %v368, %v368
    %v382 = vmul.f32 %v371, %v371
    %383 = vadd.xlane.f32.xlu0 %v381
    %v384 = vpop.xlane.xlu0 %383
    %385 = vadd.xlane.f32.xlu0 %v382
    %v386 = vpop.xlane.xlu0 %385
    %v387 = vmul.f32 %v384, %v378
    %v388 = vmul.f32 %v386, %v378
    %v389 = vmul.f32 %v379, %v379
    %v390 = vmul.f32 %v380, %v380
    %v391 = vsub.f32 %v387, %v389
    %v392 = vsub.f32 %v388, %v390
    %v393 = vmax.f32 %v391, 0.0
    %v394 = vmax.f32 %v392, 0.0
    %v395 = vsub.f32 %v368, %v379
    %v396 = vsub.f32 %v371, %v380
    %v397 = vadd.f32 %v393, 1e-05
    %v398 = vadd.f32 %v394, 1e-05
    %v399 = vrsqrt.pop %v397
    %v400 = vrsqrt.pop %v398
    %v401 = vmul.f32 %v395, %v399
    %v402 = vmul.f32 %v396, %v400
    %403 = vst [vmem:[#allocation8] sm:$0xff] %v401
    %404 = vst [vmem:[#allocation8 + $0x8] sm:$0xff] %v402
    // Predicated region
    $region26: #{tpu_custom_call.1} parent=1 // pred_check
      _
    $region27: #{tpu_custom_call.1} parent=1 // pred_check_branch
      %406 = sbr.rel (0) target = $region29
    $region28: #{tpu_custom_call.1} parent=1 // pred_region
      %s408 = ssub.s32 256, 256
      %409 = vsyncadd [#allocation4], %s408
      %s410 = sshll.u32 [#allocation8], 4
      %s411 = int_to_ptr.vmem [resolvable:$true] %s410
      %416 = dma.vmem_to_hbm [thread:$0]  %s411, 256, %s3, [#allocation4], 128, 128, 8
    $region29: #{tpu_custom_call.1} parent=1 // pred_fallthru
      _
    // Predicated region
    $region30: #{tpu_custom_call.1} parent=1 // pred_check
      _
    $region31: #{tpu_custom_call.1} parent=1 // pred_check_branch
      %418 = sbr.rel (0) target = $region33
    $region32: #{tpu_custom_call.1} parent=1 // pred_region
      %419 = dma.done [#allocation4], 256
    $region33: #{tpu_custom_call.1} parent=1 // pred_fallthru
      _
    %420 = vsyncpa [#allocation3], 1
    %421 = vsyncpa [#allocation6], 1
    %422 = vsyncpa [#allocation4], 1

</llo_original>
